<compile_context>
chip_gen: v6e
topology: v6e:2x2x1
jax: 0.10.0
libtpu: 0.0.40
codegen_flags: <defaults>
</compile_context>

<pallas_src>
import jax
import jax.numpy as jnp
from jax.experimental import pallas as pl
from jax.experimental.pallas import tpu as pltpu

LANES = 128


def _round8(n):
    return ((n + 7) // 8) * 8


def init_params(key, input_dim, dim, hidden_dims=(32, 32)):
    """PyTorch nn.Linear-style init U(-1/sqrt(fan_in), 1/sqrt(fan_in)); W is (fan_in, fan_out)."""
    def linear(k, fan_in, fan_out):
        kw, kb = jax.random.split(k)
        bound = 1.0 / jnp.sqrt(float(fan_in))
        w = jax.random.uniform(kw, (fan_in, fan_out), minval=-bound, maxval=bound,
                               dtype=jnp.float32)
        b = jax.random.uniform(kb, (fan_out,), minval=-bound, maxval=bound,
                               dtype=jnp.float32)
        return w, b

    n_corr = dim * (dim - 1) // 2
    dims = [input_dim] + list(hidden_dims)
    keys = jax.random.split(key, len(dims) - 1 + 3)
    hidden = [linear(keys[i], dims[i], dims[i + 1]) for i in range(len(dims) - 1)]
    head_mean = linear(keys[-3], hidden_dims[-1], dim)
    head_log_std = linear(keys[-2], hidden_dims[-1], dim)
    head_corr = linear(keys[-1], hidden_dims[-1], n_corr) if dim > 1 else None
    return hidden, head_mean, head_log_std, head_corr


def pack_params(hidden, head_mean, head_log_std, head_corr):
    """Pack every weight & bias into one (rows, 128) f32 slab -> a single input DMA.

    Layout (all row offsets are multiples of 8):
      [hidden weight i]  rows round8(fan_in_i), cols [0:fan_out_i]
      [fused head W]     rows round8(H), cols [0 : dim | dim : 2*dim | 2*dim : 2*dim+n_corr]
      [bias block]       8 rows: row i = bias of hidden layer i, last used row = fused head bias
    """
    sections, w_layout, off = [], [], 0
    for w, b in hidden:
        fan_in, fan_out = w.shape
        rows = _round8(fan_in)
        sections.append(jnp.zeros((rows, LANES), jnp.float32).at[:fan_in, :fan_out].set(w))
        w_layout.append((off, fan_in, fan_out))
        off += rows

    H = hidden[-1][0].shape[1]
    heads_w = [head_mean[0], head_log_std[0]] + ([head_corr[0]] if head_corr is not None else [])
    heads_b = [head_mean[1], head_log_std[1]] + ([head_corr[1]] if head_corr is not None else [])
    w_head = jnp.concatenate(heads_w, axis=1)
    b_head = jnp.concatenate(heads_b, axis=0)
    n_head = w_head.shape[1]
    assert n_head <= LANES and H <= 4096
    head_rows = _round8(H)
    sections.append(jnp.zeros((head_rows, LANES), jnp.float32).at[:H, :n_head].set(w_head))
    head_off = off
    off += head_rows

    biases = [b for _, b in hidden] + [b_head]
    bias_rows = _round8(len(biases))
    bias_block = jnp.zeros((bias_rows, LANES), jnp.float32)
    for i, b in enumerate(biases):
        bias_block = bias_block.at[i, : b.shape[0]].set(b)
    bias_off = off
    sections.append(bias_block)

    slab = jnp.concatenate(sections, axis=0)
    layout = dict(w_layout=tuple(w_layout), head_off=head_off, head_fan_in=H,
                  bias_off=bias_off, bias_rows=bias_rows, n_head=n_head)
    return slab, layout


def fcgp_forward(state, slab, layout, *, dim, log_std_min=-20.0, log_std_max=2.0,
                 block_b=256):
    """Forward pass. Returns (mean, log_std, corr) exactly like FCGP_multivar.forward."""
    B, in_dim = state.shape
    n_corr = dim * (dim - 1) // 2
    bm = B if B <= block_b else block_b          # batch tile (multiple of 8 or == B)

    w_layout = layout["w_layout"]
    head_off, H = layout["head_off"], layout["head_fan_in"]
    bias_off, bias_rows = layout["bias_off"], layout["bias_rows"]
    n_hidden = len(w_layout)

    def kernel(x_ref, p_ref, o_ref):
        h = x_ref[...]                                           # (bm, in_dim) f32
        biases = p_ref[bias_off:bias_off + bias_rows, :]         # (8, 128), one aligned load
        # hidden MLP, unrolled at trace time
        for li, (off, fan_in, fan_out) in enumerate(w_layout):
            w = p_ref[off:off + fan_in, 0:fan_out]
            b = biases[li, 0:fan_out]
            h = jnp.maximum(jnp.dot(h, w, preferred_element_type=jnp.float32) + b, 0.0)
        # fused, 128-lane-padded head -> lane-dense (bm, 128) store
        w_head = p_ref[head_off:head_off + H, :]                 # (H, 128)
        b_head = biases[n_hidden, :]                             # (128,)
        head = jnp.dot(h, w_head, preferred_element_type=jnp.float32) + b_head
        col = jax.lax.broadcasted_iota(jnp.int32, head.shape, 1)
        out = jnp.where((col >= dim) & (col < 2 * dim),
                        jnp.clip(head, log_std_min, log_std_max), head)
        if n_corr > 0:
            out = jnp.where((col >= 2 * dim) & (col < 2 * dim + n_corr),
                            jnp.tanh(head), out)
        o_ref[...] = out

    out = pl.pallas_call(
        kernel,
        out_shape=jax.ShapeDtypeStruct((B, LANES), jnp.float32),
        grid=(pl.cdiv(B, bm),),
        in_specs=[
            pl.BlockSpec((bm, in_dim), lambda i: (i, 0)),        # batch-tiled activations
            pl.BlockSpec(slab.shape, lambda i: (0, 0)),          # params: VMEM-resident
        ],
        out_specs=pl.BlockSpec((bm, LANES), lambda i: (i, 0)),
        compiler_params=pltpu.CompilerParams(
            dimension_semantics=("parallel",)),                  # shard batch over v7x TCs
    )(state.astype(jnp.float32), slab)

    mean = out[:, :dim]
    log_std = out[:, dim:2 * dim]
    corr = out[:, 2 * dim:2 * dim + n_corr] if n_corr > 0 else jnp.float32(1.0)
    return mean, log_std, corr


def fcgp_reference(state, hidden, head_mean, head_log_std, head_corr,
                   log_std_min=-20.0, log_std_max=2.0):
    h = state.astype(jnp.float32)
    for w, b in hidden:
        h = jnp.maximum(h @ w + b, 0.0)
    mean = h @ head_mean[0] + head_mean[1]
    log_std = jnp.clip(h @ head_log_std[0] + head_log_std[1], log_std_min, log_std_max)
    if head_corr is not None:
        corr = jnp.tanh(h @ head_corr[0] + head_corr[1])
    else:
        corr = jnp.float32(1.0)
    return mean, log_std, corr


if __name__ == "__main__":
    key = jax.random.PRNGKey(0)
    k_params, k_state = jax.random.split(key)

    batch = 64          # small demo batch; block_b=32 exercises a 2-step parallel grid
    input_dim = 8       # state dimension
    dim = 2             # action dimension (=> corr head has dim*(dim-1)//2 = 1 output)
    hidden_dims = (32, 32)

    hidden, head_mean, head_log_std, head_corr = init_params(
        k_params, input_dim, dim, hidden_dims)
    slab, layout = pack_params(hidden, head_mean, head_log_std, head_corr)
    state = jax.random.normal(k_state, (batch, input_dim), dtype=jnp.float32)

    mean, log_std, corr = fcgp_forward(state, slab, layout, dim=dim, block_b=32)
    jax.block_until_ready((mean, log_std, corr))

    mean_r, log_std_r, corr_r = fcgp_reference(state, hidden, head_mean,
                                               head_log_std, head_corr)
    n_corr = dim * (dim - 1) // 2
    assert mean.shape == (batch, dim)
    assert log_std.shape == (batch, dim)
    assert corr.shape == (batch, n_corr)
    assert jnp.allclose(mean, mean_r, atol=1e-5, rtol=1e-5)
    assert jnp.allclose(log_std, log_std_r, atol=1e-5, rtol=1e-5)
    assert jnp.allclose(corr, corr_r, atol=1e-5, rtol=1e-5)

    print("KERNEL_OK")
</pallas_src>

<mosaic_0001>
module attributes {stable_mosaic.version = 11 : i64} {
  func.func @kernel(%arg0: i32, %arg1: memref<32x8xf32, #tpu.memory_space<vmem>>, %arg2: memref<80x128xf32, #tpu.memory_space<vmem>>, %arg3: memref<32x128xf32, #tpu.memory_space<vmem>>) attributes {dimension_semantics = [#tpu.dimension_semantics<parallel>], iteration_bounds = array<i64: 2>, scalar_prefetch = 0 : i64, scratch_operands = 0 : i64, tpu.core_type = #tpu.core_type<tc>, window_params = [{transform_indices = @transform_0, window_bounds = array<i64: 32, 8>}, {pipeline_mode = #tpu.pipeline_mode<synchronous>, transform_indices = @transform_1, window_bounds = array<i64: 80, 128>}, {transform_indices = @transform_2, window_bounds = array<i64: 32, 128>}]} {
    %c0 = arith.constant 0 : index
    %c0_0 = arith.constant 0 : index
    %0 = vector.load %arg1[%c0, %c0_0] : memref<32x8xf32, #tpu.memory_space<vmem>>, vector<32x8xf32>
    %c72 = arith.constant 72 : index
    %c0_1 = arith.constant 0 : index
    %1 = vector.load %arg2[%c72, %c0_1] : memref<80x128xf32, #tpu.memory_space<vmem>>, vector<8x128xf32>
    %c0_2 = arith.constant 0 : index
    %c0_3 = arith.constant 0 : index
    %2 = vector.load %arg2[%c0_2, %c0_3] : memref<80x128xf32, #tpu.memory_space<vmem>>, vector<8x32xf32>
    %3 = vector.extract_strided_slice %1 {offsets = [0, 0], sizes = [1, 32], strides = [1, 1]} : vector<8x128xf32> to vector<1x32xf32>
    %4 = vector.shape_cast %3 : vector<1x32xf32> to vector<32xf32>
    %cst = arith.constant dense<0.000000e+00> : vector<32x32xf32>
    %5 = tpu.matmul %0, %2, %cst {dimension_numbers = #tpu.dot_dimension_numbers<[1], [0], [0], [1], [0, 0, 1, 1], [], []>} : vector<32x8xf32>, vector<8x32xf32>, vector<32x32xf32> -> vector<32x32xf32>
    %6 = vector.shape_cast %4 : vector<32xf32> to vector<1x32xf32>
    %7 = vector.broadcast %6 : vector<1x32xf32> to vector<32x32xf32>
    %8 = arith.addf %5, %7 : vector<32x32xf32>
    %cst_4 = arith.constant 0.000000e+00 : f32
    %9 = vector.broadcast %cst_4 : f32 to vector<32x32xf32>
    %10 = arith.maximumf %8, %9 : vector<32x32xf32>
    %c8 = arith.constant 8 : index
    %c0_5 = arith.constant 0 : index
    %11 = vector.load %arg2[%c8, %c0_5] : memref<80x128xf32, #tpu.memory_space<vmem>>, vector<32x32xf32>
    %12 = vector.extract_strided_slice %1 {offsets = [1, 0], sizes = [1, 32], strides = [1, 1]} : vector<8x128xf32> to vector<1x32xf32>
    %13 = vector.shape_cast %12 : vector<1x32xf32> to vector<32xf32>
    %cst_6 = arith.constant dense<0.000000e+00> : vector<32x32xf32>
    %14 = tpu.matmul %10, %11, %cst_6 {dimension_numbers = #tpu.dot_dimension_numbers<[1], [0], [0], [1], [0, 0, 1, 1], [], []>} : vector<32x32xf32>, vector<32x32xf32>, vector<32x32xf32> -> vector<32x32xf32>
    %15 = vector.shape_cast %13 : vector<32xf32> to vector<1x32xf32>
    %16 = vector.broadcast %15 : vector<1x32xf32> to vector<32x32xf32>
    %17 = arith.addf %14, %16 : vector<32x32xf32>
    %cst_7 = arith.constant 0.000000e+00 : f32
    %18 = vector.broadcast %cst_7 : f32 to vector<32x32xf32>
    %19 = arith.maximumf %17, %18 : vector<32x32xf32>
    %c40 = arith.constant 40 : index
    %c0_8 = arith.constant 0 : index
    %20 = vector.load %arg2[%c40, %c0_8] : memref<80x128xf32, #tpu.memory_space<vmem>>, vector<32x128xf32>
    %21 = vector.extract_strided_slice %1 {offsets = [2, 0], sizes = [1, 128], strides = [1, 1]} : vector<8x128xf32> to vector<1x128xf32>
    %22 = vector.shape_cast %21 : vector<1x128xf32> to vector<128xf32>
    %cst_9 = arith.constant dense<0.000000e+00> : vector<32x128xf32>
    %23 = tpu.matmul %19, %20, %cst_9 {dimension_numbers = #tpu.dot_dimension_numbers<[1], [0], [0], [1], [0, 0, 1, 1], [], []>} : vector<32x32xf32>, vector<32x128xf32>, vector<32x128xf32> -> vector<32x128xf32>
    %24 = vector.shape_cast %22 : vector<128xf32> to vector<1x128xf32>
    %25 = vector.broadcast %24 : vector<1x128xf32> to vector<32x128xf32>
    %26 = arith.addf %23, %25 : vector<32x128xf32>
    %27 = tpu.iota {dimensions = array<i32: 1>} : vector<32x128xi32>
    %c2_i32 = arith.constant 2 : i32
    %28 = vector.broadcast %c2_i32 : i32 to vector<32x128xi32>
    %29 = arith.cmpi sge, %27, %28 : vector<32x128xi32>
    %c4_i32 = arith.constant 4 : i32
    %30 = vector.broadcast %c4_i32 : i32 to vector<32x128xi32>
    %31 = arith.cmpi slt, %27, %30 : vector<32x128xi32>
    %32 = arith.andi %29, %31 : vector<32x128xi1>
    %cst_10 = arith.constant -2.000000e+01 : f32
    %cst_11 = arith.constant 2.000000e+00 : f32
    %33 = vector.broadcast %cst_10 : f32 to vector<32x128xf32>
    %34 = arith.maximumf %33, %26 : vector<32x128xf32>
    %35 = vector.broadcast %cst_11 : f32 to vector<32x128xf32>
    %36 = arith.minimumf %35, %34 : vector<32x128xf32>
    %37 = arith.select %32, %36, %26 : vector<32x128xi1>, vector<32x128xf32>
    %c4_i32_12 = arith.constant 4 : i32
    %38 = vector.broadcast %c4_i32_12 : i32 to vector<32x128xi32>
    %39 = arith.cmpi sge, %27, %38 : vector<32x128xi32>
    %c5_i32 = arith.constant 5 : i32
    %40 = vector.broadcast %c5_i32 : i32 to vector<32x128xi32>
    %41 = arith.cmpi slt, %27, %40 : vector<32x128xi32>
    %42 = arith.andi %39, %41 : vector<32x128xi1>
    %43 = math.tanh %26 : vector<32x128xf32>
    %44 = arith.select %42, %43, %37 : vector<32x128xi1>, vector<32x128xf32>
    %c0_13 = arith.constant 0 : index
    %c0_14 = arith.constant 0 : index
    %45 = vector.load %arg3[%c0_13, %c0_14] : memref<32x128xf32, #tpu.memory_space<vmem>>, vector<32x128xf32>
    tpu.vector_store %arg3[%c0_13, %c0_14], %44 {strides = array<i32>} : memref<32x128xf32, #tpu.memory_space<vmem>>, vector<32x128xf32>,
    return
  }
  func.func @transform_0(%arg0: i32) -> (i32, i32) {
    %c0_i32 = arith.constant 0 : i32
    %c0_i32_0 = arith.constant 0 : i32
    return %arg0, %c0_i32 : i32, i32
  }
  func.func @transform_1(%arg0: i32) -> (i32, i32) {
    %c0_i32 = arith.constant 0 : i32
    %c0_i32_0 = arith.constant 0 : i32
    %c0_i32_1 = arith.constant 0 : i32
    return %c0_i32, %c0_i32_0 : i32, i32
  }
  func.func @transform_2(%arg0: i32) -> (i32, i32) {
    %c0_i32 = arith.constant 0 : i32
    %c0_i32_0 = arith.constant 0 : i32
    return %arg0, %c0_i32 : i32, i32
  }
}

</mosaic_0001>

<llo_original>
// kernel: tpu_custom_call.1
$region0: #{tpu_custom_call.1}
  #allocation0 [shape = 'u32[]', space=smem, size = 0x4, offset = 0x4, fixed_abs, tag = 'smem constant byte address 0x4 - core index']
  #allocation1 [shape = 'u32[144,128]{1,0:T(1,128)}', space=vmem, size = 0x12000, scoped, tag = 'internal scratch']
  %s0 = inlined_call_operand.vmem [shape: f32[64,8], index: 0, kind: input, shape index: {}]
  %s1 = inlined_call_operand.hbm [shape: f32[80,128], index: 1, kind: input, shape index: {}]
  %s2 = inlined_call_operand.hbm [shape: f32[64,128], index: 2, kind: output, shape index: {}]
  %s3 = sld [smem:[#allocation0]]
  $region45: #{tpu_custom_call.1} parent=0
    _
  %s5 = ssub.s32 1, %s3
  %s6 = scalar_select 0, %s5, %s3
  $region1: #{tpu_custom_call.1} parent=0
    #allocation2 [shape = 'u8[40960]{0}', space=vmem, size = 0xa000, scoped, tag = 'input window, operand 1, single buffered']
    #allocation3 [shape = 's32[2]{0}', space=sflag, size = 0x8, scoped, tag = 'scoped memory for tpu_custom_call.1']
    #allocation4 [shape = 's32[2]{0}', space=sflag, size = 0x8, scoped, tag = 'scoped memory for tpu_custom_call.1']
    #allocation5 [shape = 'u8[32768]{0}', space=vmem, size = 0x8000, scoped, tag = 'output window, operand 0']
    %7 = vsyncpa [#allocation3], 0
    %8 = vsyncpa [#allocation4], 0
    %s9 = scalar_lea.sflag [#allocation4], 1
    %10 = vsyncpa %s9, 0
    loop: start=0, step=1, limit=4
    $region2: #{tpu_custom_call.1} parent=1 // loop_pre_header
      _
    $region3: #{tpu_custom_call.1} parent=1 // loop_header
      %s12 = sphi 0, %s16
      %p13 = scmp.ge.s32.totalorder %s12, 4
      %s22 = sphi 0, %s24
      %s25 = sphi 0, %s22
      %s26 = sphi 0, %s25
      %s42 = sphi 0, %s26
      %s46 = sphi 0, %s46
      %s48 = sphi 0, %s46
      %s49 = sphi 0, %s48
      %s63 = sphi 0, %s49
      %s69 = sphi 0, %s71
      %s72 = sphi 0, %s69
      %s73 = sphi 0, %s72
      %s89 = sphi 0, %s73
    $region4: #{tpu_custom_call.1} parent=1 // loop_header_branch
      %15 = sbr.rel (%p13) target = $region8
    $region5: #{tpu_custom_call.1} parent=1 // loop_body
      %s17 = ssub.s32 %s12, 1
      %s18 = ssub.s32 %s12, 2
      %s19 = sadd.s32 %s12, 1
      %s20 = ssub.s32 %s12, %s19
      %p21 = scmp.eq.s32.totalorder %s20, 0
      %s23 = sadd.s32 %s22, 1
      %s24 = scalar_select %p21, %s22, %s23
      %p27 = pneg %p21
      %p28 = scmp.eq.s32.totalorder %s12, 1
      %p29 = por %p27, %p28
      %p30 = scmp.ne.s32.totalorder %s22, %s25
      %p31 = scmp.eq.s32.totalorder %s12, 0
      %p32 = por %p30, %p31
      %p33 = scmp.ne.s32.totalorder %s22, %s25
      %p34 = scmp.eq.s32.totalorder %s17, 1
      %p35 = por %p33, %p34
      %p36 = scmp.ne.s32.totalorder %s25, %s26
      %p37 = scmp.eq.s32.totalorder %s17, 0
      %p38 = por %p36, %p37
      %p39 = scmp.ne.s32.totalorder %s25, %s26
      %p40 = scmp.eq.s32.totalorder %s18, 1
      %p41 = por %p39, %p40
      %p43 = scmp.ne.s32.totalorder %s26, %s42
      %p44 = scmp.eq.s32.totalorder %s18, 0
      %p45 = por %p43, %p44
      %s47 = sadd.s32 %s46, 1
      %p50 = scmp.eq.s32.totalorder %s12, 1
      %p51 = scmp.ne.s32.totalorder %s46, %s48
      %p52 = scmp.eq.s32.totalorder %s12, 0
      %p53 = por %p51, %p52
      %p54 = scmp.ne.s32.totalorder %s46, %s48
      %p55 = scmp.eq.s32.totalorder %s17, 1
      %p56 = por %p54, %p55
      %p57 = scmp.ne.s32.totalorder %s48, %s49
      %p58 = scmp.eq.s32.totalorder %s17, 0
      %p59 = por %p57, %p58
      %p60 = scmp.ne.s32.totalorder %s48, %s49
      %p61 = scmp.eq.s32.totalorder %s18, 1
      %p62 = por %p60, %p61
      %p64 = scmp.ne.s32.totalorder %s49, %s63
      %p65 = scmp.eq.s32.totalorder %s18, 0
      %p66 = por %p64, %p65
      %s67 = ssub.s32 %s12, %s19
      %p68 = scmp.eq.s32.totalorder %s67, 0
      %s70 = sadd.s32 %s69, 1
      %s71 = scalar_select %p68, %s69, %s70
      %p74 = pneg %p68
      %p75 = scmp.eq.s32.totalorder %s12, 1
      %p76 = por %p74, %p75
      %p77 = scmp.ne.s32.totalorder %s69, %s72
      %p78 = scmp.eq.s32.totalorder %s12, 0
      %p79 = por %p77, %p78
      %p80 = scmp.ne.s32.totalorder %s69, %s72
      %p81 = scmp.eq.s32.totalorder %s17, 1
      %p82 = por %p80, %p81
      %p83 = scmp.ne.s32.totalorder %s72, %s73
      %p84 = scmp.eq.s32.totalorder %s17, 0
      %p85 = por %p83, %p84
      %p86 = scmp.ne.s32.totalorder %s72, %s73
      %p87 = scmp.eq.s32.totalorder %s18, 1
      %p88 = por %p86, %p87
      %p90 = scmp.ne.s32.totalorder %s73, %s89
      %p91 = scmp.eq.s32.totalorder %s18, 0
      %p92 = por %p90, %p91
      %p93 = scmp.le.s32.totalorder 1, %s12
      %p94 = scmp.lt.s32.totalorder %s12, 3
      %p95 = pnand %p93, %p94
      %p96 = pneg %p95
      // Predicated region
      $region9: #{tpu_custom_call.1} parent=5 // pred_check
        _
      $region10: #{tpu_custom_call.1} parent=5 // pred_check_branch
        %98 = sbr.rel (%p95) target = $region12
      $region11: #{tpu_custom_call.1} parent=5 // pred_region
        %s99 = ssub.s32 %s12, 1
        // Predicated region
        $region13: #{tpu_custom_call.1} parent=11 // pred_check
          %p100 = pneg %p59
        $region14: #{tpu_custom_call.1} parent=11 // pred_check_branch
          %102 = sbr.rel (%p100) target = $region16
        $region15: #{tpu_custom_call.1} parent=11 // pred_region
          %s104 = ssub.s32 1280, 1280
          %105 = vsyncadd [#allocation3], %s104
          %s106 = sshll.u32 [#allocation2], 4
          %s107 = int_to_ptr.vmem [resolvable:$true] %s106
          %112 = dma.hbm_to_vmem [thread:$0]  %s1, 1280, %s107, [#allocation3], 128, 128, 8
        $region16: #{tpu_custom_call.1} parent=11 // pred_fallthru
          _
      $region12: #{tpu_custom_call.1} parent=5 // pred_fallthru
        _
      %p113 = scmp.lt.s32.totalorder %s12, 2
      // Predicated region
      $region17: #{tpu_custom_call.1} parent=5 // pred_check
        %p114 = pneg %p113
      $region18: #{tpu_custom_call.1} parent=5 // pred_check_branch
        %116 = sbr.rel (%p114) target = $region20
      $region19: #{tpu_custom_call.1} parent=5 // pred_region
        // Predicated region
        $region21: #{tpu_custom_call.1} parent=19 // pred_check
          %p117 = pneg %p32
        $region22: #{tpu_custom_call.1} parent=19 // pred_check_branch
          %119 = sbr.rel (%p117) target = $region24
        $region23: #{tpu_custom_call.1} parent=19 // pred_region
          %s120 = smul.u32 4, %s12
          %p121 = scmp.lt.s32.totalorder %s120, 7
          %s122 = scalar_select %p121, %s120, 7
          %s123 = smul.addr %s122, 8
          %s124 = scalar_lea.vmem %s0, %s123
          %s125 = smul.u32 4, %s12
        $region24: #{tpu_custom_call.1} parent=19 // pred_fallthru
          _
      $region20: #{tpu_custom_call.1} parent=5 // pred_fallthru
        _
      %p126 = scmp.le.s32.totalorder 1, %s12
      %p127 = scmp.lt.s32.totalorder %s12, 3
      %p128 = pnand %p126, %p127
      %p129 = pneg %p128
      // Predicated region
      $region25: #{tpu_custom_call.1} parent=5 // pred_check
        _
      $region26: #{tpu_custom_call.1} parent=5 // pred_check_branch
        %131 = sbr.rel (%p128) target = $region28
      $region27: #{tpu_custom_call.1} parent=5 // pred_region
        %s132 = ssub.s32 %s12, 1
        // Predicated region
        $region29: #{tpu_custom_call.1} parent=27 // pred_check
          %p133 = pneg %p59
        $region30: #{tpu_custom_call.1} parent=27 // pred_check_branch
          %135 = sbr.rel (%p133) target = $region32
        $region31: #{tpu_custom_call.1} parent=27 // pred_region
          %136 = dma.done [#allocation3], 1280
        $region32: #{tpu_custom_call.1} parent=27 // pred_fallthru
          _
        %s137 = smul.u32 4, %s17
        %p138 = scmp.lt.s32.totalorder %s137, 7
        %s139 = scalar_select %p138, %s137, 7
        %s140 = smul.addr %s139, 8
        %s141 = scalar_lea.vmem %s0, %s140
        %p142 = pneg %p38
        %p143 = pneg %p35
        %p144 = pneg %p59
        %p145 = pneg %p56
        %p146 = pneg %p85
        %p147 = pneg %p82
        %s148 = sand.u32 %s72, 1
        %s149 = scalar_lea.sflag [#allocation4], %s148
        %s150 = sand.u32 %s72, 1
        %s151 = smul.addr %s150, 32
        %s152 = scalar_lea.vmem [#allocation5], %s151
        %s153 = smul.u32 4, %s17
        %p154 = scmp.lt.s32.totalorder %s153, 7
        %s155 = scalar_select %p154, %s153, 7
        %s156 = smul.addr %s155, 8
        %s157 = scalar_lea.vmem %s0, %s156
        %s158 = smul.u32 4, %s17
        %s159 = smul.u32 4, %s17
        %v160 = vld [vmem:[%s157] sm:$0xff]
        %v161 = vld [vmem:[%s157 + $0x8] sm:$0xff]
        %v162 = vld [vmem:[%s157 + $0x10] sm:$0xff]
        %v163 = vld [vmem:[%s157 + $0x18] sm:$0xff]
        %v164 = vld [vmem:[#allocation2 + $0x48] sm:$0xff]
        %v165 = vld [vmem:[#allocation2] sm:$0xff]
        %v166 = vlaneseq
        %v167 = vshrl.u32 %v166, 7
        %v168 = vsub.s32 0, %v167
        %v169 = vrot.slane %v164, %v168
        %vm170 = vcmask 64512
        %v172 = vsel %vm170, %v160, 0
        %v175 = vsel %vm170, %v161, 0
        %v178 = vsel %vm170, %v162, 0
        %v181 = vsel %vm170, %v163, 0
        %183 = vmatprep.subr.mxu0 0.0
        %184 = vmatpush1.msra.mxu0 0.0
        %185 = vmatprep.subr.mxu0 0.0
        %186 = vmatpush1.msra.mxu0 0.0
        %187 = vmatprep.subr.mxu0 0.0
        %188 = vmatpush1.msra.mxu0 0.0
        %189 = vmatprep.subr.mxu0 0.0
        %190 = vmatpush1.msra.mxu0 0.0
        %191 = vmatprep.subr.mxu0 0.0
        %192 = vmatpush1.msra.mxu0 0.0
        %193 = vmatprep.subr.mxu0 0.0
        %194 = vmatpush1.msra.mxu0 0.0
        %195 = vmatprep.subr.mxu0 0.0
        %196 = vmatpush1.msra.mxu0 0.0
        %197 = vmatprep.subr.mxu0 0.0
        %198 = vmatpush1.msra.mxu0 0.0
        %199 = vmatprep.subr.mxu0 0.0
        %200 = vmatpush1.msra.mxu0 0.0
        %201 = vmatprep.subr.mxu0 0.0
        %202 = vmatpush1.msra.mxu0 0.0
        %203 = vmatprep.subr.mxu0 0.0
        %204 = vmatpush1.msra.mxu0 0.0
        %205 = vmatprep.subr.mxu0 0.0
        %206 = vmatpush1.msra.mxu0 0.0
        %207 = vmatprep.subr.mxu0 0.0
        %208 = vmatpush1.msra.mxu0 0.0
        %209 = vmatprep.subr.mxu0 0.0
        %210 = vmatpush1.msra.mxu0 0.0
        %211 = vmatprep.subr.mxu0 0.0
        %212 = vmatpush1.msra.mxu0 0.0
        %213 = vmatprep.subr.mxu0 0.0
        %214 = vmatpush1.msra.mxu0 %v165
        %215 = vmatprep.subr.mxu0 0.0
        %216 = vmatpush2.msra.mxu0 0.0
        %217 = vmatprep.subr.mxu0 0.0
        %218 = vmatpush2.msra.mxu0 0.0
        %219 = vmatprep.subr.mxu0 0.0
        %220 = vmatpush2.msra.mxu0 0.0
        %221 = vmatprep.subr.mxu0 0.0
        %222 = vmatpush2.msra.mxu0 0.0
        %223 = vmatprep.subr.mxu0 0.0
        %224 = vmatpush2.msra.mxu0 0.0
        %225 = vmatprep.subr.mxu0 0.0
        %226 = vmatpush2.msra.mxu0 0.0
        %227 = vmatprep.subr.mxu0 0.0
        %228 = vmatpush2.msra.mxu0 0.0
        %229 = vmatprep.subr.mxu0 0.0
        %230 = vmatpush2.msra.mxu0 0.0
        %231 = vmatprep.subr.mxu0 0.0
        %232 = vmatpush2.msra.mxu0 0.0
        %233 = vmatprep.subr.mxu0 0.0
        %234 = vmatpush2.msra.mxu0 0.0
        %235 = vmatprep.subr.mxu0 0.0
        %236 = vmatpush2.msra.mxu0 0.0
        %237 = vmatprep.subr.mxu0 0.0
        %238 = vmatpush2.msra.mxu0 0.0
        %239 = vmatprep.subr.mxu0 0.0
        %240 = vmatpush2.msra.mxu0 0.0
        %241 = vmatprep.subr.mxu0 0.0
        %242 = vmatpush2.msra.mxu0 0.0
        %243 = vmatprep.subr.mxu0 0.0
        %244 = vmatpush2.msra.mxu0 0.0
        %245 = vmatprep.subr.mxu0 0.0
        %246 = vmatpush2.msra.mxu0 0.0
        %247 = vmatprep.mubr.f32.mxu0 0.0
        %248 = vmatmul.mubr.f32.gmra.mxu0 %v172
        %v249 = vpop.f32.mrf.mxu0
        %v250 = vadd.f32 %v169, %v249
        %v251 = vpop.f32.mrf.mxu0
        %252 = vmatprep.mubr.f32.mxu0 0.0
        %253 = vmatmul.mubr.f32.gmra.mxu0 %v175
        %v254 = vpop.f32.mrf.mxu0
        %v255 = vadd.f32 %v169, %v254
        %v256 = vpop.f32.mrf.mxu0
        %257 = vmatprep.mubr.f32.mxu0 0.0
        %258 = vmatmul.mubr.f32.gmra.mxu0 %v178
        %v259 = vpop.f32.mrf.mxu0
        %v260 = vadd.f32 %v169, %v259
        %v261 = vpop.f32.mrf.mxu0
        %262 = vmatprep.mubr.f32.mxu0 0.0
        %263 = vmatmul.mubr.f32.gmra.mxu0 %v181
        %v264 = vpop.f32.mrf.mxu0
        %v265 = vadd.f32 %v169, %v264
        %v266 = vpop.f32.mrf.mxu0
        %267 = vdwg.mxu0
        %v268 = vmax.f32 %v250, 0.0
        %v269 = vmax.f32 %v255, 0.0
        %v270 = vmax.f32 %v260, 0.0
        %v271 = vmax.f32 %v265, 0.0
        %v272 = vld [vmem:[#allocation2 + $0x8] sm:$0xff]
        %v273 = vld [vmem:[#allocation2 + $0x10] sm:$0xff]
        %v274 = vld [vmem:[#allocation2 + $0x18] sm:$0xff]
        %v275 = vld [vmem:[#allocation2 + $0x20] sm:$0xff]
        %v276 = vlaneseq
        %v277 = vshrl.u32 %v276, 7
        %v278 = vsub.s32 1, %v277
        %v279 = vrot.slane %v164, %v278
        %vm280 = vcmask 261120
        %v282 = vsel %vm280, %v268, 0
        %v285 = vsel %vm280, %v269, 0
        %v288 = vsel %vm280, %v270, 0
        %v291 = vsel %vm280, %v271, 0
        %293 = vmatprep.subr.mxu0 0.0
        %294 = vmatpush1.msra.mxu0 0.0
        %295 = vmatprep.subr.mxu0 0.0
        %296 = vmatpush1.msra.mxu0 0.0
        %297 = vmatprep.subr.mxu0 0.0
        %298 = vmatpush1.msra.mxu0 0.0
        %299 = vmatprep.subr.mxu0 0.0
        %300 = vmatpush1.msra.mxu0 0.0
        %301 = vmatprep.subr.mxu0 0.0
        %302 = vmatpush1.msra.mxu0 0.0
        %303 = vmatprep.subr.mxu0 0.0
        %304 = vmatpush1.msra.mxu0 0.0
        %305 = vmatprep.subr.mxu0 0.0
        %306 = vmatpush1.msra.mxu0 0.0
        %307 = vmatprep.subr.mxu0 0.0
        %308 = vmatpush1.msra.mxu0 0.0
        %309 = vmatprep.subr.mxu0 0.0
        %310 = vmatpush1.msra.mxu0 0.0
        %311 = vmatprep.subr.mxu0 0.0
        %312 = vmatpush1.msra.mxu0 0.0
        %313 = vmatprep.subr.mxu0 0.0
        %314 = vmatpush1.msra.mxu0 0.0
        %315 = vmatprep.subr.mxu0 0.0
        %316 = vmatpush1.msra.mxu0 0.0
        %317 = vmatprep.subr.mxu0 0.0
        %318 = vmatpush1.msra.mxu0 %v275
        %319 = vmatprep.subr.mxu0 0.0
        %320 = vmatpush1.msra.mxu0 %v274
        %321 = vmatprep.subr.mxu0 0.0
        %322 = vmatpush1.msra.mxu0 %v273
        %323 = vmatprep.subr.mxu0 0.0
        %324 = vmatpush1.msra.mxu0 %v272
        %325 = vmatprep.subr.mxu0 0.0
        %326 = vmatpush2.msra.mxu0 0.0
        %327 = vmatprep.subr.mxu0 0.0
        %328 = vmatpush2.msra.mxu0 0.0
        %329 = vmatprep.subr.mxu0 0.0
        %330 = vmatpush2.msra.mxu0 0.0
        %331 = vmatprep.subr.mxu0 0.0
        %332 = vmatpush2.msra.mxu0 0.0
        %333 = vmatprep.subr.mxu0 0.0
        %334 = vmatpush2.msra.mxu0 0.0
        %335 = vmatprep.subr.mxu0 0.0
        %336 = vmatpush2.msra.mxu0 0.0
        %337 = vmatprep.subr.mxu0 0.0
        %338 = vmatpush2.msra.mxu0 0.0
        %339 = vmatprep.subr.mxu0 0.0
        %340 = vmatpush2.msra.mxu0 0.0
        %341 = vmatprep.subr.mxu0 0.0
        %342 = vmatpush2.msra.mxu0 0.0
        %343 = vmatprep.subr.mxu0 0.0
        %344 = vmatpush2.msra.mxu0 0.0
        %345 = vmatprep.subr.mxu0 0.0
        %346 = vmatpush2.msra.mxu0 0.0
        %347 = vmatprep.subr.mxu0 0.0
        %348 = vmatpush2.msra.mxu0 0.0
        %349 = vmatprep.subr.mxu0 0.0
        %350 = vmatpush2.msra.mxu0 0.0
        %351 = vmatprep.subr.mxu0 0.0
        %352 = vmatpush2.msra.mxu0 0.0
        %353 = vmatprep.subr.mxu0 0.0
        %354 = vmatpush2.msra.mxu0 0.0
        %355 = vmatprep.subr.mxu0 0.0
        %356 = vmatpush2.msra.mxu0 0.0
        %357 = vmatprep.mubr.f32.mxu0 0.0
        %358 = vmatmul.mubr.f32.gmra.mxu0 %v282
        %v359 = vpop.f32.mrf.mxu0
        %v360 = vadd.f32 %v279, %v359
        %v361 = vpop.f32.mrf.mxu0
        %362 = vmatprep.mubr.f32.mxu0 0.0
        %363 = vmatmul.mubr.f32.gmra.mxu0 %v285
        %v364 = vpop.f32.mrf.mxu0
        %v365 = vadd.f32 %v279, %v364
        %v366 = vpop.f32.mrf.mxu0
        %367 = vmatprep.mubr.f32.mxu0 0.0
        %368 = vmatmul.mubr.f32.gmra.mxu0 %v288
        %v369 = vpop.f32.mrf.mxu0
        %v370 = vadd.f32 %v279, %v369
        %v371 = vpop.f32.mrf.mxu0
        %372 = vmatprep.mubr.f32.mxu0 0.0
        %373 = vmatmul.mubr.f32.gmra.mxu0 %v291
        %v374 = vpop.f32.mrf.mxu0
        %v375 = vadd.f32 %v279, %v374
        %v376 = vpop.f32.mrf.mxu0
        %377 = vdwg.mxu0
        %v378 = vmax.f32 %v360, 0.0
        %v379 = vmax.f32 %v365, 0.0
        %v380 = vmax.f32 %v370, 0.0
        %v381 = vmax.f32 %v375, 0.0
        %v382 = vld [vmem:[#allocation2 + $0x28] sm:$0xff]
        %v383 = vld [vmem:[#allocation2 + $0x30] sm:$0xff]
        %v384 = vld [vmem:[#allocation2 + $0x38] sm:$0xff]
        %v385 = vld [vmem:[#allocation2 + $0x40] sm:$0xff]
        %v386 = vlaneseq
        %v387 = vshrl.u32 %v386, 7
        %v388 = vsub.s32 2, %v387
        %v389 = vrot.slane %v164, %v388
        %v391 = vsel %vm280, %v378, 0
        %v394 = vsel %vm280, %v379, 0
        %v397 = vsel %vm280, %v380, 0
        %v400 = vsel %vm280, %v381, 0
        %402 = vmatprep.subr.mxu0 0.0
        %403 = vmatpush1.msra.mxu0 0.0
        %404 = vmatprep.subr.mxu0 0.0
        %405 = vmatpush1.msra.mxu0 0.0
        %406 = vmatprep.subr.mxu0 0.0
        %407 = vmatpush1.msra.mxu0 0.0
        %408 = vmatprep.subr.mxu0 0.0
        %409 = vmatpush1.msra.mxu0 0.0
        %410 = vmatprep.subr.mxu0 0.0
        %411 = vmatpush1.msra.mxu0 0.0
        %412 = vmatprep.subr.mxu0 0.0
        %413 = vmatpush1.msra.mxu0 0.0
        %414 = vmatprep.subr.mxu0 0.0
        %415 = vmatpush1.msra.mxu0 0.0
        %416 = vmatprep.subr.mxu0 0.0
        %417 = vmatpush1.msra.mxu0 0.0
        %418 = vmatprep.subr.mxu0 0.0
        %419 = vmatpush1.msra.mxu0 0.0
        %420 = vmatprep.subr.mxu0 0.0
        %421 = vmatpush1.msra.mxu0 0.0
        %422 = vmatprep.subr.mxu0 0.0
        %423 = vmatpush1.msra.mxu0 0.0
        %424 = vmatprep.subr.mxu0 0.0
        %425 = vmatpush1.msra.mxu0 0.0
        %426 = vmatprep.subr.mxu0 0.0
        %427 = vmatpush1.msra.mxu0 %v385
        %428 = vmatprep.subr.mxu0 0.0
        %429 = vmatpush1.msra.mxu0 %v384
        %430 = vmatprep.subr.mxu0 0.0
        %431 = vmatpush1.msra.mxu0 %v383
        %432 = vmatprep.subr.mxu0 0.0
        %433 = vmatpush1.msra.mxu0 %v382
        %434 = vmatprep.subr.mxu0 0.0
        %435 = vmatpush2.msra.mxu0 0.0
        %436 = vmatprep.subr.mxu0 0.0
        %437 = vmatpush2.msra.mxu0 0.0
        %438 = vmatprep.subr.mxu0 0.0
        %439 = vmatpush2.msra.mxu0 0.0
        %440 = vmatprep.subr.mxu0 0.0
        %441 = vmatpush2.msra.mxu0 0.0
        %442 = vmatprep.subr.mxu0 0.0
        %443 = vmatpush2.msra.mxu0 0.0
        %444 = vmatprep.subr.mxu0 0.0
        %445 = vmatpush2.msra.mxu0 0.0
        %446 = vmatprep.subr.mxu0 0.0
        %447 = vmatpush2.msra.mxu0 0.0
        %448 = vmatprep.subr.mxu0 0.0
        %449 = vmatpush2.msra.mxu0 0.0
        %450 = vmatprep.subr.mxu0 0.0
        %451 = vmatpush2.msra.mxu0 0.0
        %452 = vmatprep.subr.mxu0 0.0
        %453 = vmatpush2.msra.mxu0 0.0
        %454 = vmatprep.subr.mxu0 0.0
        %455 = vmatpush2.msra.mxu0 0.0
        %456 = vmatprep.subr.mxu0 0.0
        %457 = vmatpush2.msra.mxu0 0.0
        %458 = vmatprep.subr.mxu0 0.0
        %459 = vmatpush2.msra.mxu0 0.0
        %460 = vmatprep.subr.mxu0 0.0
        %461 = vmatpush2.msra.mxu0 0.0
        %462 = vmatprep.subr.mxu0 0.0
        %463 = vmatpush2.msra.mxu0 0.0
        %464 = vmatprep.subr.mxu0 0.0
        %465 = vmatpush2.msra.mxu0 0.0
        %466 = vmatprep.mubr.f32.mxu0 0.0
        %467 = vmatmul.mubr.f32.gmra.mxu0 %v391
        %v468 = vpop.f32.mrf.mxu0
        %v469 = vadd.f32 %v389, %v468
        %v470 = vpop.f32.mrf.mxu0
        %471 = vmatprep.mubr.f32.mxu0 0.0
        %472 = vmatmul.mubr.f32.gmra.mxu0 %v394
        %v473 = vpop.f32.mrf.mxu0
        %v474 = vadd.f32 %v389, %v473
        %v475 = vpop.f32.mrf.mxu0
        %476 = vmatprep.mubr.f32.mxu0 0.0
        %477 = vmatmul.mubr.f32.gmra.mxu0 %v397
        %v478 = vpop.f32.mrf.mxu0
        %v479 = vadd.f32 %v389, %v478
        %v480 = vpop.f32.mrf.mxu0
        %481 = vmatprep.mubr.f32.mxu0 0.0
        %482 = vmatmul.mubr.f32.gmra.mxu0 %v400
        %v483 = vpop.f32.mrf.mxu0
        %v484 = vadd.f32 %v389, %v483
        %v485 = vpop.f32.mrf.mxu0
        %486 = vdwg.mxu0
        %v487 = vlaneseq
        %v488 = vand.u32 %v487, 127
        %vm489 = vcmp.ge.s32.totalorder %v488, 2
        %vm490 = vcmp.lt.s32.totalorder %v488, 4
        %vm491 = vmand %vm489, %vm490
        %v492 = vmax.f32 %v469, -20.0
        %v493 = vmax.f32 %v474, -20.0
        %v494 = vmax.f32 %v479, -20.0
        %v495 = vmax.f32 %v484, -20.0
        %v496 = vmin.f32 %v492, 2.0
        %v497 = vmin.f32 %v493, 2.0
        %v498 = vmin.f32 %v494, 2.0
        %v499 = vmin.f32 %v495, 2.0
        %v500 = vsel %vm491, %v496, %v469
        %v501 = vsel %vm491, %v497, %v474
        %v502 = vsel %vm491, %v498, %v479
        %v503 = vsel %vm491, %v499, %v484
        %vm504 = vcmp.ge.s32.totalorder %v488, 4
        %vm505 = vcmp.lt.s32.totalorder %v488, 5
        %vm506 = vmand %vm504, %vm505
        %v507 = vtanh.pop %v469
        %v508 = vtanh.pop %v474
        %v509 = vtanh.pop %v479
        %v510 = vtanh.pop %v484
        %v511 = vsel %vm506, %v507, %v500
        %v512 = vsel %vm506, %v508, %v501
        %v513 = vsel %vm506, %v509, %v502
        %v514 = vsel %vm506, %v510, %v503
        %515 = vst [vmem:[%s152] sm:$0xff] %v511
        %516 = vst [vmem:[%s152 + $0x8] sm:$0xff] %v512
        %517 = vst [vmem:[%s152 + $0x10] sm:$0xff] %v513
        %518 = vst [vmem:[%s152 + $0x18] sm:$0xff] %v514
        %s519 = sand.u32 %s72, 1
        %s520 = scalar_lea.sflag [#allocation4], %s519
        %s521 = sand.u32 %s72, 1
        %s522 = smul.addr %s521, 32
        %s523 = scalar_lea.vmem [#allocation5], %s522
        // Predicated region
        $region33: #{tpu_custom_call.1} parent=27 // pred_check
          %p524 = pneg %p82
        $region34: #{tpu_custom_call.1} parent=27 // pred_check_branch
          %526 = sbr.rel (%p524) target = $region36
        $region35: #{tpu_custom_call.1} parent=27 // pred_region
          %s527 = smul.u32 4, %s17
          %s529 = ssub.s32 512, 512
          %530 = vsyncadd %s520, %s529
          %s531 = smul.addr %s527, 128
          %s532 = scalar_lea.hbm %s2, %s531
          %s533 = sshll.u32 %s523, 4
          %s534 = int_to_ptr.vmem [resolvable:$true] %s533
          %539 = dma.vmem_to_hbm [thread:$0]  %s534, 512, %s532, %s520, 128, 128, 8
        $region36: #{tpu_custom_call.1} parent=27 // pred_fallthru
          _
      $region28: #{tpu_custom_call.1} parent=5 // pred_fallthru
        _
      %p540 = scmp.le.s32.totalorder 2, %s12
      // Predicated region
      $region37: #{tpu_custom_call.1} parent=5 // pred_check
        %p541 = pneg %p540
      $region38: #{tpu_custom_call.1} parent=5 // pred_check_branch
        %543 = sbr.rel (%p541) target = $region40
      $region39: #{tpu_custom_call.1} parent=5 // pred_region
        %s544 = ssub.s32 %s12, 2
        // Predicated region
        $region41: #{tpu_custom_call.1} parent=39 // pred_check
          %p545 = pneg %p88
        $region42: #{tpu_custom_call.1} parent=39 // pred_check_branch
          %547 = sbr.rel (%p545) target = $region44
        $region43: #{tpu_custom_call.1} parent=39 // pred_region
          %s548 = sand.u32 %s73, 1
          %s549 = scalar_lea.sflag [#allocation4], %s548
          %s550 = sand.u32 %s73, 1
          %s551 = smul.addr %s550, 32
          %s552 = scalar_lea.vmem [#allocation5], %s551
          %553 = dma.done %s549, 512
        $region44: #{tpu_custom_call.1} parent=39 // pred_fallthru
          _
      $region40: #{tpu_custom_call.1} parent=5 // pred_fallthru
        _
    $region6: #{tpu_custom_call.1} parent=1 // loop_footer
      %s16 = sadd.s32 1, %s12
    $region7: #{tpu_custom_call.1} parent=1 // loop_footer_branch
      %11 = sbr.rel target = $region3
    $region8: #{tpu_custom_call.1} parent=1 // loop_exit
      _
    %554 = vsyncpa [#allocation3], 1
    %s555 = scalar_lea.sflag [#allocation3], 1
    %556 = vsyncpa %s555, 1
    %557 = vsyncpa [#allocation4], 1
    %s558 = scalar_lea.sflag [#allocation4], 1
    %559 = vsyncpa %s558, 1

</llo_original>
